<compile_context>
chip_gen: v5e
topology: v5e:2x2
jax: 0.10.0
libtpu: 0.0.40
codegen_flags: <defaults>
</compile_context>

<pallas_src>
import jax
import jax.numpy as jnp
from jax.experimental import pallas as pl
from jax.experimental.pallas import tpu as pltpu

EPS_BN = 1e-5


# --------------------------------------------------------------------------
# Pass 1: per-tile BatchNorm partial statistics of hc = x @ W0 (b0-centered).
# Zero-padded rows give hc == 0 exactly, so they contribute nothing.
# --------------------------------------------------------------------------
def stats_kernel(x_ref, w0_ref, psum_ref, psumsq_ref):
    hc = jnp.dot(x_ref[...], w0_ref[...],           # bf16 x bf16 -> f32 accum
                 preferred_element_type=jnp.float32)
    psum_ref[...] = jnp.sum(hc, axis=0, keepdims=True)[None]        # (1,1,H0)
    psumsq_ref[...] = jnp.sum(hc * hc, axis=0, keepdims=True)[None]  # (1,1,H0)


def _resident(shape):
    # Same block for every grid step -> stays VMEM-resident, DMA'd once.
    return pl.BlockSpec(shape, lambda *_: (0,) * len(shape))


def _choose_tile(batch, tile_b):
    """Multiple of 128, capped, shrunk until >=2 grid steps (v7x megacore)."""
    tile_b = max(128, (min(tile_b, 2048) // 128) * 128)
    while tile_b > 128 and pl.cdiv(batch, tile_b) < 2:
        tile_b = max(128, ((tile_b // 2) // 128) * 128)
    return tile_b


def autoencoder_forward(x, params, *, tile_b=1024, out_dtype=jnp.float32):
    """x: [B, 512] float array.  params: dict of weights (see init_params)."""
    B, D_in = x.shape
    H0 = params["w0"].shape[1]
    H1 = params["w1"].shape[1]
    D0 = params["w2"].shape[1]
    D1 = params["w3"].shape[1]

    tile_b = _choose_tile(B, tile_b)
    nt = pl.cdiv(B, tile_b)
    b_pad = nt * tile_b

    # bf16 activations on the wire (halves x's HBM traffic); pad batch to the tile.
    x_bf16 = x.astype(jnp.bfloat16)
    if b_pad != B:
        x_bf16 = jnp.pad(x_bf16, ((0, b_pad - B), (0, 0)))

    parallel = pltpu.CompilerParams(dimension_semantics=("parallel",))

    # ---------------- pass 1: BN partial statistics only ----------------
    psum, psumsq = pl.pallas_call(
        stats_kernel,
        out_shape=(
            jax.ShapeDtypeStruct((nt, 1, H0), jnp.float32),
            jax.ShapeDtypeStruct((nt, 1, H0), jnp.float32),
        ),
        grid_spec=pltpu.PrefetchScalarGridSpec(
            num_scalar_prefetch=0,
            grid=(nt,),
            in_specs=[
                pl.BlockSpec((tile_b, D_in), lambda i: (i, 0)),   # x tile (streamed)
                _resident((D_in, H0)),                            # W0 (VMEM-resident)
            ],
            out_specs=[
                pl.BlockSpec((1, 1, H0), lambda i: (i, 0, 0)),    # per-tile sum
                pl.BlockSpec((1, 1, H0), lambda i: (i, 0, 0)),    # per-tile sumsq
            ],
        ),
        compiler_params=parallel,
        cost_estimate=pl.CostEstimate(
            flops=2 * b_pad * D_in * H0,
            transcendentals=0,
            bytes_accessed=b_pad * D_in * 2 + D_in * H0 * 2 + 2 * nt * H0 * 4,
        ),
    )(x_bf16, params["w0"])

    inv_b = 1.0 / float(B)   # real batch size (padded rows contribute 0 to stats)

    # ------------- pass 2: full forward, BN combine done in-kernel -------------
    def fwd_kernel(x_ref, psum_ref, psumsq_ref, gamma_ref, beta_ref,
                   w0_ref, w1_ref, b1_ref, w2_ref, b2_ref, w3_ref, b3_ref,
                   out_ref):
        # Combine per-tile partials (b0-centered); full-batch biased variance,
        # matching PyTorch training-mode BatchNorm1d forward.
        mean_c = jnp.sum(psum_ref[...], axis=0) * inv_b          # (1, H0)
        ex2_c = jnp.sum(psumsq_ref[...], axis=0) * inv_b
        var = jnp.maximum(ex2_c - mean_c * mean_c, 0.0)
        scale = gamma_ref[...] * jax.lax.rsqrt(var + EPS_BN)
        shift = beta_ref[...] - mean_c * scale                   # b0 cancels exactly

        # Recompute hc = x @ W0 (cheaper than an HBM round-trip of h).
        hc = jnp.dot(x_ref[...], w0_ref[...],
                     preferred_element_type=jnp.float32)
        h = jnp.maximum(hc * scale + shift, 0.0)                 # BN affine + ReLU

        z = jnp.dot(h.astype(jnp.bfloat16), w1_ref[...],
                    preferred_element_type=jnp.float32) + b1_ref[...]
        # L2 normalize (matches torch x / x.norm(dim=-1, keepdim=True); no eps).
        z = z * jax.lax.rsqrt(jnp.sum(z * z, axis=-1, keepdims=True))

        d = jnp.maximum(jnp.dot(z.astype(jnp.bfloat16), w2_ref[...],
                                preferred_element_type=jnp.float32) + b2_ref[...],
                        0.0)

        y = jnp.dot(d.astype(jnp.bfloat16), w3_ref[...],
                    preferred_element_type=jnp.float32) + b3_ref[...]
        y = y * jax.lax.rsqrt(jnp.sum(y * y, axis=-1, keepdims=True))
        out_ref[...] = y.astype(out_ref.dtype)

    y = pl.pallas_call(
        fwd_kernel,
        out_shape=jax.ShapeDtypeStruct((b_pad, D1), out_dtype),
        grid_spec=pltpu.PrefetchScalarGridSpec(
            num_scalar_prefetch=0,
            grid=(nt,),
            in_specs=[
                pl.BlockSpec((tile_b, D_in), lambda i: (i, 0)),   # x tile (streamed)
                _resident((nt, 1, H0)),                           # BN partial sums
                _resident((nt, 1, H0)),                           # BN partial sumsqs
                _resident((1, H0)),                               # gamma
                _resident((1, H0)),                               # beta
                _resident((D_in, H0)),                            # W0
                _resident((H0, H1)), _resident((1, H1)),          # W1, b1
                _resident((H1, D0)), _resident((1, D0)),          # W2, b2
                _resident((D0, D1)), _resident((1, D1)),          # W3, b3
            ],
            out_specs=pl.BlockSpec((tile_b, D1), lambda i: (i, 0)),
        ),
        compiler_params=parallel,
        cost_estimate=pl.CostEstimate(
            flops=2 * b_pad * (D_in * H0 + H0 * H1 + H1 * D0 + D0 * D1),
            transcendentals=2 * b_pad + 2 * H0,
            bytes_accessed=(b_pad * D_in * 2
                            + (D_in * H0 + H0 * H1 + H1 * D0 + D0 * D1) * 2
                            + b_pad * D1 * jnp.dtype(out_dtype).itemsize
                            + 2 * nt * H0 * 4),
        ),
    )(x_bf16, psum, psumsq,
      params["bn_gamma"], params["bn_beta"], params["w0"],
      params["w1"], params["b1"],
      params["w2"], params["b2"],
      params["w3"], params["b3"])

    return y[:B] if b_pad != B else y


def init_params(key, encoder_hidden_dims=(256, 128), decoder_hidden_dims=(256, 512)):
    """Deterministic synthetic parameters (shapes match nn.Linear / nn.BatchNorm1d).

    Weights are stored pre-transposed as [in, out] and in bfloat16 (MXU-native);
    biases and BN affine stay float32.  Note: b0 is only used by the reference —
    it cancels out of the BatchNorm that immediately follows Linear(512, H0).
    """
    h0, h1 = encoder_hidden_dims
    d0, d1 = decoder_hidden_dims
    ks = jax.random.split(key, 4)

    def lin(k, fan_in, fan_out):
        kw, kb = jax.random.split(k)
        bound = 1.0 / jnp.sqrt(fan_in)
        w = jax.random.uniform(kw, (fan_in, fan_out), jnp.float32, -bound, bound)
        b = jax.random.uniform(kb, (1, fan_out), jnp.float32, -bound, bound)
        return w.astype(jnp.bfloat16), b

    w0, b0 = lin(ks[0], 512, h0)
    w1, b1 = lin(ks[1], h0, h1)
    w2, b2 = lin(ks[2], h1, d0)
    w3, b3 = lin(ks[3], d0, d1)
    return dict(
        w0=w0, b0=b0,
        bn_gamma=jnp.ones((1, h0), jnp.float32),   # BatchNorm1d init: weight=1
        bn_beta=jnp.zeros((1, h0), jnp.float32),   # BatchNorm1d init: bias=0
        w1=w1, b1=b1, w2=w2, b2=b2, w3=w3, b3=b3,
    )


def reference_forward(x, p):
    """Pure-JAX f32 reference (weights upcast from bf16) for correctness check."""
    w0 = p["w0"].astype(jnp.float32)
    w1 = p["w1"].astype(jnp.float32)
    w2 = p["w2"].astype(jnp.float32)
    w3 = p["w3"].astype(jnp.float32)
    h = x @ w0 + p["b0"]
    mean = jnp.mean(h, axis=0, keepdims=True)
    var = jnp.mean((h - mean) ** 2, axis=0, keepdims=True)
    h = (h - mean) / jnp.sqrt(var + EPS_BN) * p["bn_gamma"] + p["bn_beta"]
    h = jnp.maximum(h, 0.0)
    z = h @ w1 + p["b1"]
    z = z / jnp.linalg.norm(z, axis=-1, keepdims=True)
    d = jnp.maximum(z @ w2 + p["b2"], 0.0)
    y = d @ w3 + p["b3"]
    y = y / jnp.linalg.norm(y, axis=-1, keepdims=True)
    return y


if __name__ == "__main__":
    key = jax.random.PRNGKey(0)
    kx, kp = jax.random.split(key)

    # B=200: not a multiple of 128 -> exercises padding, the 2-tile grid
    # (v7x megacore path) and the cross-tile BN-statistic combine.
    B = 200
    x = jax.random.normal(kx, (B, 512), dtype=jnp.float32)
    params = init_params(kp)

    out = jax.block_until_ready(autoencoder_forward(x, params))

    ref = reference_forward(x, params)
    assert out.shape == (B, 512), out.shape
    max_err = float(jnp.max(jnp.abs(out.astype(jnp.float32) - ref)))
    # bf16 matmuls (f32 accumulation) vs f32 reference: loosened tolerance.
    assert jnp.allclose(out.astype(jnp.float32), ref, atol=3e-2, rtol=3e-2), (
        f"mismatch vs JAX reference (max abs err {max_err:.3e})")

    print("KERNEL_OK")
</pallas_src>

<mosaic_0001>
module attributes {stable_mosaic.version = 11 : i64} {
  func.func @stats_kernel(%arg0: i32, %arg1: memref<128x512xbf16, #tpu.memory_space<vmem>>, %arg2: memref<512x256xbf16, #tpu.memory_space<vmem>>, %arg3: memref<1x1x256xf32, #tpu.memory_space<vmem>>, %arg4: memref<1x1x256xf32, #tpu.memory_space<vmem>>) attributes {dimension_semantics = [#tpu.dimension_semantics<parallel>], iteration_bounds = array<i64: 2>, scalar_prefetch = 0 : i64, scratch_operands = 0 : i64, tpu.core_type = #tpu.core_type<tc>, window_params = [{transform_indices = @transform_0, window_bounds = array<i64: 128, 512>}, {pipeline_mode = #tpu.pipeline_mode<synchronous>, transform_indices = @transform_1, window_bounds = array<i64: 512, 256>}, {transform_indices = @transform_2, window_bounds = array<i64: 1, 1, 256>}, {transform_indices = @transform_3, window_bounds = array<i64: 1, 1, 256>}]} {
    %c0 = arith.constant 0 : index
    %c0_0 = arith.constant 0 : index
    %0 = vector.load %arg1[%c0, %c0_0] : memref<128x512xbf16, #tpu.memory_space<vmem>>, vector<128x512xbf16>
    %c0_1 = arith.constant 0 : index
    %c0_2 = arith.constant 0 : index
    %1 = vector.load %arg2[%c0_1, %c0_2] : memref<512x256xbf16, #tpu.memory_space<vmem>>, vector<512x256xbf16>
    %cst = arith.constant dense<0.000000e+00> : vector<128x256xf32>
    %2 = tpu.matmul %0, %1, %cst {dimension_numbers = #tpu.dot_dimension_numbers<[1], [0], [0], [1], [0, 0, 1, 1], [], []>} : vector<128x512xbf16>, vector<512x256xbf16>, vector<128x256xf32> -> vector<128x256xf32>
    %cst_3 = arith.constant dense<0.000000e+00> : vector<256xf32>
    %3 = vector.multi_reduction <add>, %2, %cst_3 [0] : vector<128x256xf32> to vector<256xf32>
    %4 = vector.shape_cast %3 : vector<256xf32> to vector<1x256xf32>
    %5 = vector.shape_cast %4 : vector<1x256xf32> to vector<1x1x256xf32>
    %c0_4 = arith.constant 0 : index
    %c0_5 = arith.constant 0 : index
    %c0_6 = arith.constant 0 : index
    %6 = vector.load %arg3[%c0_4, %c0_5, %c0_6] : memref<1x1x256xf32, #tpu.memory_space<vmem>>, vector<1x1x256xf32>
    tpu.vector_store %arg3[%c0_4, %c0_5, %c0_6], %5 {strides = array<i32>} : memref<1x1x256xf32, #tpu.memory_space<vmem>>, vector<1x1x256xf32>,
    %7 = arith.mulf %2, %2 : vector<128x256xf32>
    %cst_7 = arith.constant dense<0.000000e+00> : vector<256xf32>
    %8 = vector.multi_reduction <add>, %7, %cst_7 [0] : vector<128x256xf32> to vector<256xf32>
    %9 = vector.shape_cast %8 : vector<256xf32> to vector<1x256xf32>
    %10 = vector.shape_cast %9 : vector<1x256xf32> to vector<1x1x256xf32>
    %c0_8 = arith.constant 0 : index
    %c0_9 = arith.constant 0 : index
    %c0_10 = arith.constant 0 : index
    %11 = vector.load %arg4[%c0_8, %c0_9, %c0_10] : memref<1x1x256xf32, #tpu.memory_space<vmem>>, vector<1x1x256xf32>
    tpu.vector_store %arg4[%c0_8, %c0_9, %c0_10], %10 {strides = array<i32>} : memref<1x1x256xf32, #tpu.memory_space<vmem>>, vector<1x1x256xf32>,
    return
  }
  func.func @transform_0(%arg0: i32) -> (i32, i32) {
    %c0_i32 = arith.constant 0 : i32
    %c0_i32_0 = arith.constant 0 : i32
    return %arg0, %c0_i32 : i32, i32
  }
  func.func @transform_1(%arg0: i32) -> (i32, i32) {
    %c0_i32 = arith.constant 0 : i32
    %c0_i32_0 = arith.constant 0 : i32
    %c0_i32_1 = arith.constant 0 : i32
    return %c0_i32, %c0_i32_0 : i32, i32
  }
  func.func @transform_2(%arg0: i32) -> (i32, i32, i32) {
    %c0_i32 = arith.constant 0 : i32
    %c0_i32_0 = arith.constant 0 : i32
    %c0_i32_1 = arith.constant 0 : i32
    return %arg0, %c0_i32, %c0_i32_0 : i32, i32, i32
  }
  func.func @transform_3(%arg0: i32) -> (i32, i32, i32) {
    %c0_i32 = arith.constant 0 : i32
    %c0_i32_0 = arith.constant 0 : i32
    %c0_i32_1 = arith.constant 0 : i32
    return %arg0, %c0_i32, %c0_i32_0 : i32, i32, i32
  }
}

</mosaic_0001>

<llo_original>
// kernel: tpu_custom_call.1
$region0: #{tpu_custom_call.1}
  #allocation0 [shape = 'u32[]', space=smem, size = 0x4, offset = 0x4, fixed_abs, tag = 'smem constant byte address 0x4 - core index']
  #allocation1 [shape = 'u32[72,128]{1,0:T(1,128)}', space=vmem, size = 0x9000, scoped, tag = 'internal scratch']
  %s0 = inlined_call_operand.hbm [shape: bf16[256,512], index: 0, kind: input, shape index: {}]
  %s1 = inlined_call_operand.hbm [shape: bf16[512,256], index: 1, kind: input, shape index: {}]
  %s2 = inlined_call_operand.hbm [shape: f32[2,1,256], index: 2, kind: output, shape index: {0}]
  %s3 = inlined_call_operand.hbm [shape: f32[2,1,256], index: 3, kind: output, shape index: {1}]
  %4 = xla_tuple %s2, %s3
  %s5 = sld [smem:[#allocation0]]
  $region57: #{tpu_custom_call.1} parent=0
    _
  %s7 = ssub.s32 1, %s5
  %s8 = scalar_select 0, %s7, %s5
  $region1: #{tpu_custom_call.1} parent=0
    #allocation2 [shape = 'u8[262144]{0}', space=vmem, size = 0x40000, scoped, tag = 'input window, operand 0']
    #allocation3 [shape = 's32[2]{0}', space=sflag, size = 0x8, scoped, tag = 'scoped memory for tpu_custom_call.1']
    #allocation4 [shape = 's32[2]{0}', space=sflag, size = 0x8, scoped, tag = 'scoped memory for tpu_custom_call.1']
    #allocation5 [shape = 'u8[262144]{0}', space=vmem, size = 0x40000, scoped, tag = 'input window, operand 1, single buffered']
    #allocation6 [shape = 's32[1]{0}', space=sflag, size = 0x4, scoped, tag = 'scoped memory for tpu_custom_call.1']
    #allocation7 [shape = 'u8[2048]{0}', space=vmem, size = 0x800, scoped, tag = 'output window, operand 0']
    #allocation8 [shape = 'u8[2048]{0}', space=vmem, size = 0x800, scoped, tag = 'output window, operand 1']
    #allocation9 [shape = 's32[2]{0}', space=sflag, size = 0x8, scoped, tag = 'scoped memory for tpu_custom_call.1']
    %9 = vsyncpa [#allocation3], 0
    %s10 = scalar_lea.sflag [#allocation3], 1
    %11 = vsyncpa %s10, 0
    %12 = vsyncpa [#allocation6], 0
    %13 = vsyncpa [#allocation4], 0
    %s14 = scalar_lea.sflag [#allocation4], 1
    %15 = vsyncpa %s14, 0
    %16 = vsyncpa [#allocation9], 0
    %s17 = scalar_lea.sflag [#allocation9], 1
    %18 = vsyncpa %s17, 0
    loop: start=0, step=1, limit=4
    $region2: #{tpu_custom_call.1} parent=1 // loop_pre_header
      _
    $region3: #{tpu_custom_call.1} parent=1 // loop_header
      %s20 = sphi 0, %s24
      %p21 = scmp.ge.s32.totalorder %s20, 4
      %s30 = sphi 0, %s32
      %s33 = sphi 0, %s30
      %s34 = sphi 0, %s33
      %s50 = sphi 0, %s34
      %s54 = sphi 0, %s54
      %s56 = sphi 0, %s54
      %s57 = sphi 0, %s56
      %s71 = sphi 0, %s57
      %s77 = sphi 0, %s79
      %s80 = sphi 0, %s77
      %s81 = sphi 0, %s80
      %s97 = sphi 0, %s81
      %s103 = sphi 0, %s105
      %s106 = sphi 0, %s103
      %s107 = sphi 0, %s106
      %s123 = sphi 0, %s107
    $region4: #{tpu_custom_call.1} parent=1 // loop_header_branch
      %23 = sbr.rel (%p21) target = $region8
    $region5: #{tpu_custom_call.1} parent=1 // loop_body
      %s25 = ssub.s32 %s20, 1
      %s26 = ssub.s32 %s20, 2
      %s27 = sadd.s32 %s20, 1
      %s28 = ssub.s32 %s20, %s27
      %p29 = scmp.eq.s32.totalorder %s28, 0
      %s31 = sadd.s32 %s30, 1
      %s32 = scalar_select %p29, %s30, %s31
      %p35 = pneg %p29
      %p36 = scmp.eq.s32.totalorder %s20, 1
      %p37 = por %p35, %p36
      %p38 = scmp.ne.s32.totalorder %s30, %s33
      %p39 = scmp.eq.s32.totalorder %s20, 0
      %p40 = por %p38, %p39
      %p41 = scmp.ne.s32.totalorder %s30, %s33
      %p42 = scmp.eq.s32.totalorder %s25, 1
      %p43 = por %p41, %p42
      %p44 = scmp.ne.s32.totalorder %s33, %s34
      %p45 = scmp.eq.s32.totalorder %s25, 0
      %p46 = por %p44, %p45
      %p47 = scmp.ne.s32.totalorder %s33, %s34
      %p48 = scmp.eq.s32.totalorder %s26, 1
      %p49 = por %p47, %p48
      %p51 = scmp.ne.s32.totalorder %s34, %s50
      %p52 = scmp.eq.s32.totalorder %s26, 0
      %p53 = por %p51, %p52
      %s55 = sadd.s32 %s54, 1
      %p58 = scmp.eq.s32.totalorder %s20, 1
      %p59 = scmp.ne.s32.totalorder %s54, %s56
      %p60 = scmp.eq.s32.totalorder %s20, 0
      %p61 = por %p59, %p60
      %p62 = scmp.ne.s32.totalorder %s54, %s56
      %p63 = scmp.eq.s32.totalorder %s25, 1
      %p64 = por %p62, %p63
      %p65 = scmp.ne.s32.totalorder %s56, %s57
      %p66 = scmp.eq.s32.totalorder %s25, 0
      %p67 = por %p65, %p66
      %p68 = scmp.ne.s32.totalorder %s56, %s57
      %p69 = scmp.eq.s32.totalorder %s26, 1
      %p70 = por %p68, %p69
      %p72 = scmp.ne.s32.totalorder %s57, %s71
      %p73 = scmp.eq.s32.totalorder %s26, 0
      %p74 = por %p72, %p73
      %s75 = ssub.s32 %s20, %s27
      %p76 = scmp.eq.s32.totalorder %s75, 0
      %s78 = sadd.s32 %s77, 1
      %s79 = scalar_select %p76, %s77, %s78
      %p82 = pneg %p76
      %p83 = scmp.eq.s32.totalorder %s20, 1
      %p84 = por %p82, %p83
      %p85 = scmp.ne.s32.totalorder %s77, %s80
      %p86 = scmp.eq.s32.totalorder %s20, 0
      %p87 = por %p85, %p86
      %p88 = scmp.ne.s32.totalorder %s77, %s80
      %p89 = scmp.eq.s32.totalorder %s25, 1
      %p90 = por %p88, %p89
      %p91 = scmp.ne.s32.totalorder %s80, %s81
      %p92 = scmp.eq.s32.totalorder %s25, 0
      %p93 = por %p91, %p92
      %p94 = scmp.ne.s32.totalorder %s80, %s81
      %p95 = scmp.eq.s32.totalorder %s26, 1
      %p96 = por %p94, %p95
      %p98 = scmp.ne.s32.totalorder %s81, %s97
      %p99 = scmp.eq.s32.totalorder %s26, 0
      %p100 = por %p98, %p99
      %s101 = ssub.s32 %s20, %s27
      %p102 = scmp.eq.s32.totalorder %s101, 0
      %s104 = sadd.s32 %s103, 1
      %s105 = scalar_select %p102, %s103, %s104
      %p108 = pneg %p102
      %p109 = scmp.eq.s32.totalorder %s20, 1
      %p110 = por %p108, %p109
      %p111 = scmp.ne.s32.totalorder %s103, %s106
      %p112 = scmp.eq.s32.totalorder %s20, 0
      %p113 = por %p111, %p112
      %p114 = scmp.ne.s32.totalorder %s103, %s106
      %p115 = scmp.eq.s32.totalorder %s25, 1
      %p116 = por %p114, %p115
      %p117 = scmp.ne.s32.totalorder %s106, %s107
      %p118 = scmp.eq.s32.totalorder %s25, 0
      %p119 = por %p117, %p118
      %p120 = scmp.ne.s32.totalorder %s106, %s107
      %p121 = scmp.eq.s32.totalorder %s26, 1
      %p122 = por %p120, %p121
      %p124 = scmp.ne.s32.totalorder %s107, %s123
      %p125 = scmp.eq.s32.totalorder %s26, 0
      %p126 = por %p124, %p125
      %p127 = scmp.le.s32.totalorder 1, %s20
      %p128 = scmp.lt.s32.totalorder %s20, 3
      %p129 = pnand %p127, %p128
      %p130 = pneg %p129
      // Predicated region
      $region9: #{tpu_custom_call.1} parent=5 // pred_check
        _
      $region10: #{tpu_custom_call.1} parent=5 // pred_check_branch
        %132 = sbr.rel (%p129) target = $region12
      $region11: #{tpu_custom_call.1} parent=5 // pred_region
        %s133 = ssub.s32 %s20, 1
        // Predicated region
        $region13: #{tpu_custom_call.1} parent=11 // pred_check
          %p134 = pneg %p67
        $region14: #{tpu_custom_call.1} parent=11 // pred_check_branch
          %136 = sbr.rel (%p134) target = $region16
        $region15: #{tpu_custom_call.1} parent=11 // pred_region
          %138 = vsyncadd [#allocation6], 0
          %s139 = sshll.u32 %s1, 4
          %s140 = int_to_ptr.hbm [resolvable:$true] %s139
          %s141 = sshll.u32 [#allocation5], 4
          %s142 = int_to_ptr.vmem [resolvable:$true] %s141
          %147 = dma.hbm_to_vmem [thread:$0]  %s140, 8192, %s142, [#allocation6], 128, 128, 8
        $region16: #{tpu_custom_call.1} parent=11 // pred_fallthru
          _
      $region12: #{tpu_custom_call.1} parent=5 // pred_fallthru
        _
      %p148 = scmp.lt.s32.totalorder %s20, 2
      // Predicated region
      $region17: #{tpu_custom_call.1} parent=5 // pred_check
        %p149 = pneg %p148
      $region18: #{tpu_custom_call.1} parent=5 // pred_check_branch
        %151 = sbr.rel (%p149) target = $region20
      $region19: #{tpu_custom_call.1} parent=5 // pred_region
        // Predicated region
        $region21: #{tpu_custom_call.1} parent=19 // pred_check
          %p152 = pneg %p40
        $region22: #{tpu_custom_call.1} parent=19 // pred_check_branch
          %154 = sbr.rel (%p152) target = $region24
        $region23: #{tpu_custom_call.1} parent=19 // pred_region
          %s155 = sand.u32 %s30, 1
          %s156 = scalar_lea.sflag [#allocation3], %s155
          %s157 = sand.u32 %s30, 1
          %s158 = smul.addr %s157, 256
          %s159 = scalar_lea.vmem [#allocation2], %s158
          %s160 = smul.u32 16, %s20
          %162 = vsyncadd %s156, 0
          %s163 = smul.addr %s160, 4
          %s164 = smul.addr %s163, 4
          %s165 = scalar_lea.hbm %s0, %s164
          %s166 = sshll.u32 %s165, 4
          %s167 = int_to_ptr.hbm [resolvable:$true] %s166
          %s168 = sshll.u32 %s159, 4
          %s169 = int_to_ptr.vmem [resolvable:$true] %s168
          %174 = dma.hbm_to_vmem [thread:$0]  %s167, 4096, %s169, %s156, 256, 256, 16
        $region24: #{tpu_custom_call.1} parent=19 // pred_fallthru
          _
      $region20: #{tpu_custom_call.1} parent=5 // pred_fallthru
        _
      %p175 = scmp.le.s32.totalorder 1, %s20
      %p176 = scmp.lt.s32.totalorder %s20, 3
      %p177 = pnand %p175, %p176
      %p178 = pneg %p177
      // Predicated region
      $region25: #{tpu_custom_call.1} parent=5 // pred_check
        _
      $region26: #{tpu_custom_call.1} parent=5 // pred_check_branch
        %180 = sbr.rel (%p177) target = $region28
      $region27: #{tpu_custom_call.1} parent=5 // pred_region
        %s181 = ssub.s32 %s20, 1
        %s182 = sand.u32 %s33, 1
        %s183 = scalar_lea.sflag [#allocation3], %s182
        %s184 = sand.u32 %s33, 1
        %s185 = smul.addr %s184, 256
        %s186 = scalar_lea.vmem [#allocation2], %s185
        // Predicated region
        $region29: #{tpu_custom_call.1} parent=27 // pred_check
          %p187 = pneg %p46
        $region30: #{tpu_custom_call.1} parent=27 // pred_check_branch
          %189 = sbr.rel (%p187) target = $region32
        $region31: #{tpu_custom_call.1} parent=27 // pred_region
          %191 = dma.done %s183, 4096
        $region32: #{tpu_custom_call.1} parent=27 // pred_fallthru
          _
        // Predicated region
        $region33: #{tpu_custom_call.1} parent=27 // pred_check
          %p192 = pneg %p67
        $region34: #{tpu_custom_call.1} parent=27 // pred_check_branch
          %194 = sbr.rel (%p192) target = $region36
        $region35: #{tpu_custom_call.1} parent=27 // pred_region
          %196 = dma.done [#allocation6], 8192
        $region36: #{tpu_custom_call.1} parent=27 // pred_fallthru
          _
        %s197 = sand.u32 %s33, 1
        %s198 = scalar_lea.sflag [#allocation3], %s197
        %s199 = sand.u32 %s33, 1
        %s200 = smul.addr %s199, 256
        %s201 = scalar_lea.vmem [#allocation2], %s200
        %p202 = pneg %p46
        %p203 = pneg %p43
        %p204 = pneg %p67
        %p205 = pneg %p64
        %p206 = pneg %p93
        %p207 = pneg %p90
        %s208 = sand.u32 %s80, 1
        %s209 = scalar_lea.sflag [#allocation4], %s208
        %s210 = sand.u32 %s80, 1
        %s211 = smul.addr %s210, 2
        %s212 = scalar_lea.vmem [#allocation7], %s211
        %p213 = pneg %p119
        %p214 = pneg %p116
        %s215 = sand.u32 %s106, 1
        %s216 = scalar_lea.sflag [#allocation9], %s215
        %s217 = sand.u32 %s106, 1
        %s218 = smul.addr %s217, 2
        %s219 = scalar_lea.vmem [#allocation8], %s218
        %s220 = smul.u32 16, %s25
        %v221 = vld [vmem:[%s186] sm:$0xff]
        %v222 = vld [vmem:[%s186 + $0x8] sm:$0xff]
        %v223 = vld [vmem:[%s186 + $0x10] sm:$0xff]
        %v224 = vld [vmem:[%s186 + $0x18] sm:$0xff]
        %v225 = vld [vmem:[%s186 + $0x20] sm:$0xff]
        %v226 = vld [vmem:[%s186 + $0x28] sm:$0xff]
        %v227 = vld [vmem:[%s186 + $0x30] sm:$0xff]
        %v228 = vld [vmem:[%s186 + $0x38] sm:$0xff]
        %v229 = vld [vmem:[%s186 + $0x40] sm:$0xff]
        %v230 = vld [vmem:[%s186 + $0x48] sm:$0xff]
        %v231 = vld [vmem:[%s186 + $0x50] sm:$0xff]
        %v232 = vld [vmem:[%s186 + $0x58] sm:$0xff]
        %v233 = vld [vmem:[%s186 + $0x60] sm:$0xff]
        %v234 = vld [vmem:[%s186 + $0x68] sm:$0xff]
        %v235 = vld [vmem:[%s186 + $0x70] sm:$0xff]
        %v236 = vld [vmem:[%s186 + $0x78] sm:$0xff]
        %v237 = vld [vmem:[%s186 + $0x80] sm:$0xff]
        %v238 = vld [vmem:[%s186 + $0x88] sm:$0xff]
        %v239 = vld [vmem:[%s186 + $0x90] sm:$0xff]
        %v240 = vld [vmem:[%s186 + $0x98] sm:$0xff]
        %v241 = vld [vmem:[%s186 + $0xa0] sm:$0xff]
        %v242 = vld [vmem:[%s186 + $0xa8] sm:$0xff]
        %v243 = vld [vmem:[%s186 + $0xb0] sm:$0xff]
        %v244 = vld [vmem:[%s186 + $0xb8] sm:$0xff]
        %v245 = vld [vmem:[%s186 + $0xc0] sm:$0xff]
        %v246 = vld [vmem:[%s186 + $0xc8] sm:$0xff]
        %v247 = vld [vmem:[%s186 + $0xd0] sm:$0xff]
        %v248 = vld [vmem:[%s186 + $0xd8] sm:$0xff]
        %v249 = vld [vmem:[%s186 + $0xe0] sm:$0xff]
        %v250 = vld [vmem:[%s186 + $0xe8] sm:$0xff]
        %v251 = vld [vmem:[%s186 + $0xf0] sm:$0xff]
        %v252 = vld [vmem:[%s186 + $0xf8] sm:$0xff]
        %v253 = vld [vmem:[#allocation5] sm:$0xff]
        %v254 = vld [vmem:[#allocation5 + $0x8] sm:$0xff]
        %v255 = vld [vmem:[#allocation5 + $0x10] sm:$0xff]
        %v256 = vld [vmem:[#allocation5 + $0x18] sm:$0xff]
        %v257 = vld [vmem:[#allocation5 + $0x20] sm:$0xff]
        %v258 = vld [vmem:[#allocation5 + $0x28] sm:$0xff]
        %v259 = vld [vmem:[#allocation5 + $0x30] sm:$0xff]
        %v260 = vld [vmem:[#allocation5 + $0x38] sm:$0xff]
        %v261 = vld [vmem:[#allocation5 + $0x40] sm:$0xff]
        %v262 = vld [vmem:[#allocation5 + $0x48] sm:$0xff]
        %v263 = vld [vmem:[#allocation5 + $0x50] sm:$0xff]
        %v264 = vld [vmem:[#allocation5 + $0x58] sm:$0xff]
        %v265 = vld [vmem:[#allocation5 + $0x60] sm:$0xff]
        %v266 = vld [vmem:[#allocation5 + $0x68] sm:$0xff]
        %v267 = vld [vmem:[#allocation5 + $0x70] sm:$0xff]
        %v268 = vld [vmem:[#allocation5 + $0x78] sm:$0xff]
        %v269 = vld [vmem:[#allocation5 + $0x80] sm:$0xff]
        %v270 = vld [vmem:[#allocation5 + $0x88] sm:$0xff]
        %v271 = vld [vmem:[#allocation5 + $0x90] sm:$0xff]
        %v272 = vld [vmem:[#allocation5 + $0x98] sm:$0xff]
        %v273 = vld [vmem:[#allocation5 + $0xa0] sm:$0xff]
        %v274 = vld [vmem:[#allocation5 + $0xa8] sm:$0xff]
        %v275 = vld [vmem:[#allocation5 + $0xb0] sm:$0xff]
        %v276 = vld [vmem:[#allocation5 + $0xb8] sm:$0xff]
        %v277 = vld [vmem:[#allocation5 + $0xc0] sm:$0xff]
        %v278 = vld [vmem:[#allocation5 + $0xc8] sm:$0xff]
        %v279 = vld [vmem:[#allocation5 + $0xd0] sm:$0xff]
        %v280 = vld [vmem:[#allocation5 + $0xd8] sm:$0xff]
        %v281 = vld [vmem:[#allocation5 + $0xe0] sm:$0xff]
        %v282 = vld [vmem:[#allocation5 + $0xe8] sm:$0xff]
        %v283 = vld [vmem:[#allocation5 + $0xf0] sm:$0xff]
        %v284 = vld [vmem:[#allocation5 + $0xf8] sm:$0xff]
        %v285 = vld [vmem:[#allocation5 + $0x100] sm:$0xff]
        %v286 = vld [vmem:[#allocation5 + $0x108] sm:$0xff]
        %v287 = vld [vmem:[#allocation5 + $0x110] sm:$0xff]
        %v288 = vld [vmem:[#allocation5 + $0x118] sm:$0xff]
        %v289 = vld [vmem:[#allocation5 + $0x120] sm:$0xff]
        %v290 = vld [vmem:[#allocation5 + $0x128] sm:$0xff]
        %v291 = vld [vmem:[#allocation5 + $0x130] sm:$0xff]
        %v292 = vld [vmem:[#allocation5 + $0x138] sm:$0xff]
        %v293 = vld [vmem:[#allocation5 + $0x140] sm:$0xff]
        %v294 = vld [vmem:[#allocation5 + $0x148] sm:$0xff]
        %v295 = vld [vmem:[#allocation5 + $0x150] sm:$0xff]
        %v296 = vld [vmem:[#allocation5 + $0x158] sm:$0xff]
        %v297 = vld [vmem:[#allocation5 + $0x160] sm:$0xff]
        %v298 = vld [vmem:[#allocation5 + $0x168] sm:$0xff]
        %v299 = vld [vmem:[#allocation5 + $0x170] sm:$0xff]
        %v300 = vld [vmem:[#allocation5 + $0x178] sm:$0xff]
        %v301 = vld [vmem:[#allocation5 + $0x180] sm:$0xff]
        %v302 = vld [vmem:[#allocation5 + $0x188] sm:$0xff]
        %v303 = vld [vmem:[#allocation5 + $0x190] sm:$0xff]
        %v304 = vld [vmem:[#allocation5 + $0x198] sm:$0xff]
        %v305 = vld [vmem:[#allocation5 + $0x1a0] sm:$0xff]
        %v306 = vld [vmem:[#allocation5 + $0x1a8] sm:$0xff]
        %v307 = vld [vmem:[#allocation5 + $0x1b0] sm:$0xff]
        %v308 = vld [vmem:[#allocation5 + $0x1b8] sm:$0xff]
        %v309 = vld [vmem:[#allocation5 + $0x1c0] sm:$0xff]
        %v310 = vld [vmem:[#allocation5 + $0x1c8] sm:$0xff]
        %v311 = vld [vmem:[#allocation5 + $0x1d0] sm:$0xff]
        %v312 = vld [vmem:[#allocation5 + $0x1d8] sm:$0xff]
        %v313 = vld [vmem:[#allocation5 + $0x1e0] sm:$0xff]
        %v314 = vld [vmem:[#allocation5 + $0x1e8] sm:$0xff]
        %v315 = vld [vmem:[#allocation5 + $0x1f0] sm:$0xff]
        %v316 = vld [vmem:[#allocation5 + $0x1f8] sm:$0xff]
        %v349 = vunpack.c.l.b16 %v221
        %v350 = vunpack.c.h.b16 %v221
        %v351 = vunpack.c.l.b16 %v222
        %v352 = vunpack.c.h.b16 %v222
        %v353 = vunpack.c.l.b16 %v223
        %v354 = vunpack.c.h.b16 %v223
        %v355 = vunpack.c.l.b16 %v224
        %v356 = vunpack.c.h.b16 %v224
        %v357 = vunpack.c.l.b16 %v225
        %v358 = vunpack.c.h.b16 %v225
        %v359 = vunpack.c.l.b16 %v226
        %v360 = vunpack.c.h.b16 %v226
        %v361 = vunpack.c.l.b16 %v227
        %v362 = vunpack.c.h.b16 %v227
        %v363 = vunpack.c.l.b16 %v228
        %v364 = vunpack.c.h.b16 %v228
        %v365 = vunpack.c.l.b16 %v229
        %v366 = vunpack.c.h.b16 %v229
        %v367 = vunpack.c.l.b16 %v230
        %v368 = vunpack.c.h.b16 %v230
        %v369 = vunpack.c.l.b16 %v231
        %v370 = vunpack.c.h.b16 %v231
        %v371 = vunpack.c.l.b16 %v232
        %v372 = vunpack.c.h.b16 %v232
        %v373 = vunpack.c.l.b16 %v233
        %v374 = vunpack.c.h.b16 %v233
        %v375 = vunpack.c.l.b16 %v234
        %v376 = vunpack.c.h.b16 %v234
        %v377 = vunpack.c.l.b16 %v235
        %v378 = vunpack.c.h.b16 %v235
        %v379 = vunpack.c.l.b16 %v236
        %v380 = vunpack.c.h.b16 %v236
        %v381 = vunpack.c.l.b16 %v237
        %v382 = vunpack.c.h.b16 %v237
        %v383 = vunpack.c.l.b16 %v238
        %v384 = vunpack.c.h.b16 %v238
        %v385 = vunpack.c.l.b16 %v239
        %v386 = vunpack.c.h.b16 %v239
        %v387 = vunpack.c.l.b16 %v240
        %v388 = vunpack.c.h.b16 %v240
        %v389 = vunpack.c.l.b16 %v241
        %v390 = vunpack.c.h.b16 %v241
        %v391 = vunpack.c.l.b16 %v242
        %v392 = vunpack.c.h.b16 %v242
        %v393 = vunpack.c.l.b16 %v243
        %v394 = vunpack.c.h.b16 %v243
        %v395 = vunpack.c.l.b16 %v244
        %v396 = vunpack.c.h.b16 %v244
        %v397 = vunpack.c.l.b16 %v245
        %v398 = vunpack.c.h.b16 %v245
        %v399 = vunpack.c.l.b16 %v246
        %v400 = vunpack.c.h.b16 %v246
        %v401 = vunpack.c.l.b16 %v247
        %v402 = vunpack.c.h.b16 %v247
        %v403 = vunpack.c.l.b16 %v248
        %v404 = vunpack.c.h.b16 %v248
        %v405 = vunpack.c.l.b16 %v249
        %v406 = vunpack.c.h.b16 %v249
        %v407 = vunpack.c.l.b16 %v250
        %v408 = vunpack.c.h.b16 %v250
        %v409 = vunpack.c.l.b16 %v251
        %v410 = vunpack.c.h.b16 %v251
        %v411 = vunpack.c.l.b16 %v252
        %v412 = vunpack.c.h.b16 %v252
        %v413 = vpack.c.b16 %v353, %v349
        %v414 = vpack.c.b16 %v354, %v350
        %v415 = vpack.c.b16 %v355, %v351
        %v416 = vpack.c.b16 %v356, %v352
        %v417 = vpack.c.b16 %v361, %v357
        %v418 = vpack.c.b16 %v362, %v358
        %v419 = vpack.c.b16 %v363, %v359
        %v420 = vpack.c.b16 %v364, %v360
        %v421 = vpack.c.b16 %v369, %v365
        %v422 = vpack.c.b16 %v370, %v366
        %v423 = vpack.c.b16 %v371, %v367
        %v424 = vpack.c.b16 %v372, %v368
        %v425 = vpack.c.b16 %v377, %v373
        %v426 = vpack.c.b16 %v378, %v374
        %v427 = vpack.c.b16 %v379, %v375
        %v428 = vpack.c.b16 %v380, %v376
        %v429 = vpack.c.b16 %v385, %v381
        %v430 = vpack.c.b16 %v386, %v382
        %v431 = vpack.c.b16 %v387, %v383
        %v432 = vpack.c.b16 %v388, %v384
        %v433 = vpack.c.b16 %v393, %v389
        %v434 = vpack.c.b16 %v394, %v390
        %v435 = vpack.c.b16 %v395, %v391
        %v436 = vpack.c.b16 %v396, %v392
        %v437 = vpack.c.b16 %v401, %v397
        %v438 = vpack.c.b16 %v402, %v398
        %v439 = vpack.c.b16 %v403, %v399
        %v440 = vpack.c.b16 %v404, %v400
        %v441 = vpack.c.b16 %v409, %v405
        %v442 = vpack.c.b16 %v410, %v406
        %v443 = vpack.c.b16 %v411, %v407
        %v444 = vpack.c.b16 %v412, %v408
        %v541 = vunpack.c.l.b16 %v253
        %v542 = vunpack.c.h.b16 %v253
        %v543 = vunpack.c.l.b16 %v254
        %v544 = vunpack.c.h.b16 %v254
        %v545 = vunpack.c.l.b16 %v255
        %v546 = vunpack.c.h.b16 %v255
        %v547 = vunpack.c.l.b16 %v256
        %v548 = vunpack.c.h.b16 %v256
        %v549 = vunpack.c.l.b16 %v257
        %v550 = vunpack.c.h.b16 %v257
        %v551 = vunpack.c.l.b16 %v258
        %v552 = vunpack.c.h.b16 %v258
        %v553 = vunpack.c.l.b16 %v259
        %v554 = vunpack.c.h.b16 %v259
        %v555 = vunpack.c.l.b16 %v260
        %v556 = vunpack.c.h.b16 %v260
        %v557 = vunpack.c.l.b16 %v261
        %v558 = vunpack.c.h.b16 %v261
        %v559 = vunpack.c.l.b16 %v262
        %v560 = vunpack.c.h.b16 %v262
        %v561 = vunpack.c.l.b16 %v263
        %v562 = vunpack.c.h.b16 %v263
        %v563 = vunpack.c.l.b16 %v264
        %v564 = vunpack.c.h.b16 %v264
        %v565 = vunpack.c.l.b16 %v265
        %v566 = vunpack.c.h.b16 %v265
        %v567 = vunpack.c.l.b16 %v266
        %v568 = vunpack.c.h.b16 %v266
        %v569 = vunpack.c.l.b16 %v267
        %v570 = vunpack.c.h.b16 %v267
        %v571 = vunpack.c.l.b16 %v268
        %v572 = vunpack.c.h.b16 %v268
        %v573 = vunpack.c.l.b16 %v269
        %v574 = vunpack.c.h.b16 %v269
        %v575 = vunpack.c.l.b16 %v270
        %v576 = vunpack.c.h.b16 %v270
        %v577 = vunpack.c.l.b16 %v271
        %v578 = vunpack.c.h.b16 %v271
        %v579 = vunpack.c.l.b16 %v272
        %v580 = vunpack.c.h.b16 %v272
        %v581 = vunpack.c.l.b16 %v273
        %v582 = vunpack.c.h.b16 %v273
        %v583 = vunpack.c.l.b16 %v274
        %v584 = vunpack.c.h.b16 %v274
        %v585 = vunpack.c.l.b16 %v275
        %v586 = vunpack.c.h.b16 %v275
        %v587 = vunpack.c.l.b16 %v276
        %v588 = vunpack.c.h.b16 %v276
        %v589 = vunpack.c.l.b16 %v277
        %v590 = vunpack.c.h.b16 %v277
        %v591 = vunpack.c.l.b16 %v278
        %v592 = vunpack.c.h.b16 %v278
        %v593 = vunpack.c.l.b16 %v279
        %v594 = vunpack.c.h.b16 %v279
        %v595 = vunpack.c.l.b16 %v280
        %v596 = vunpack.c.h.b16 %v280
        %v597 = vunpack.c.l.b16 %v281
        %v598 = vunpack.c.h.b16 %v281
        %v599 = vunpack.c.l.b16 %v282
        %v600 = vunpack.c.h.b16 %v282
        %v601 = vunpack.c.l.b16 %v283
        %v602 = vunpack.c.h.b16 %v283
        %v603 = vunpack.c.l.b16 %v284
        %v604 = vunpack.c.h.b16 %v284
        %v605 = vunpack.c.l.b16 %v285
        %v606 = vunpack.c.h.b16 %v285
        %v607 = vunpack.c.l.b16 %v286
        %v608 = vunpack.c.h.b16 %v286
        %v609 = vunpack.c.l.b16 %v287
        %v610 = vunpack.c.h.b16 %v287
        %v611 = vunpack.c.l.b16 %v288
        %v612 = vunpack.c.h.b16 %v288
        %v613 = vunpack.c.l.b16 %v289
        %v614 = vunpack.c.h.b16 %v289
        %v615 = vunpack.c.l.b16 %v290
        %v616 = vunpack.c.h.b16 %v290
        %v617 = vunpack.c.l.b16 %v291
        %v618 = vunpack.c.h.b16 %v291
        %v619 = vunpack.c.l.b16 %v292
        %v620 = vunpack.c.h.b16 %v292
        %v621 = vunpack.c.l.b16 %v293
        %v622 = vunpack.c.h.b16 %v293
        %v623 = vunpack.c.l.b16 %v294
        %v624 = vunpack.c.h.b16 %v294
        %v625 = vunpack.c.l.b16 %v295
        %v626 = vunpack.c.h.b16 %v295
        %v627 = vunpack.c.l.b16 %v296
        %v628 = vunpack.c.h.b16 %v296
        %v629 = vunpack.c.l.b16 %v297
        %v630 = vunpack.c.h.b16 %v297
        %v631 = vunpack.c.l.b16 %v298
        %v632 = vunpack.c.h.b16 %v298
        %v633 = vunpack.c.l.b16 %v299
        %v634 = vunpack.c.h.b16 %v299
        %v635 = vunpack.c.l.b16 %v300
        %v636 = vunpack.c.h.b16 %v300
        %v637 = vunpack.c.l.b16 %v301
        %v638 = vunpack.c.h.b16 %v301
        %v639 = vunpack.c.l.b16 %v302
        %v640 = vunpack.c.h.b16 %v302
        %v641 = vunpack.c.l.b16 %v303
        %v642 = vunpack.c.h.b16 %v303
        %v643 = vunpack.c.l.b16 %v304
        %v644 = vunpack.c.h.b16 %v304
        %v645 = vunpack.c.l.b16 %v305
        %v646 = vunpack.c.h.b16 %v305
        %v647 = vunpack.c.l.b16 %v306
        %v648 = vunpack.c.h.b16 %v306
        %v649 = vunpack.c.l.b16 %v307
        %v650 = vunpack.c.h.b16 %v307
        %v651 = vunpack.c.l.b16 %v308
        %v652 = vunpack.c.h.b16 %v308
        %v653 = vunpack.c.l.b16 %v309
        %v654 = vunpack.c.h.b16 %v309
        %v655 = vunpack.c.l.b16 %v310
        %v656 = vunpack.c.h.b16 %v310
        %v657 = vunpack.c.l.b16 %v311
        %v658 = vunpack.c.h.b16 %v311
        %v659 = vunpack.c.l.b16 %v312
        %v660 = vunpack.c.h.b16 %v312
        %v661 = vunpack.c.l.b16 %v313
        %v662 = vunpack.c.h.b16 %v313
        %v663 = vunpack.c.l.b16 %v314
        %v664 = vunpack.c.h.b16 %v314
        %v665 = vunpack.c.l.b16 %v315
        %v666 = vunpack.c.h.b16 %v315
        %v667 = vunpack.c.l.b16 %v316
        %v668 = vunpack.c.h.b16 %v316
        %v669 = vpack.c.b16 %v543, %v541
        %v670 = vpack.c.b16 %v544, %v542
        %v671 = vpack.c.b16 %v547, %v545
        %v672 = vpack.c.b16 %v548, %v546
        %v673 = vpack.c.b16 %v551, %v549
        %v674 = vpack.c.b16 %v552, %v550
        %v675 = vpack.c.b16 %v555, %v553
        %v676 = vpack.c.b16 %v556, %v554
        %v677 = vpack.c.b16 %v559, %v557
        %v678 = vpack.c.b16 %v560, %v558
        %v679 = vpack.c.b16 %v563, %v561
        %v680 = vpack.c.b16 %v564, %v562
        %v681 = vpack.c.b16 %v567, %v565
        %v682 = vpack.c.b16 %v568, %v566
        %v683 = vpack.c.b16 %v571, %v569
        %v684 = vpack.c.b16 %v572, %v570
        %v685 = vpack.c.b16 %v575, %v573
        %v686 = vpack.c.b16 %v576, %v574
        %v687 = vpack.c.b16 %v579, %v577
        %v688 = vpack.c.b16 %v580, %v578
        %v689 = vpack.c.b16 %v583, %v581
        %v690 = vpack.c.b16 %v584, %v582
        %v691 = vpack.c.b16 %v587, %v585
        %v692 = vpack.c.b16 %v588, %v586
        %v693 = vpack.c.b16 %v591, %v589
        %v694 = vpack.c.b16 %v592, %v590
        %v695 = vpack.c.b16 %v595, %v593
        %v696 = vpack.c.b16 %v596, %v594
        %v697 = vpack.c.b16 %v599, %v597
        %v698 = vpack.c.b16 %v600, %v598
        %v699 = vpack.c.b16 %v603, %v601
        %v700 = vpack.c.b16 %v604, %v602
        %v701 = vpack.c.b16 %v607, %v605
        %v702 = vpack.c.b16 %v608, %v606
        %v703 = vpack.c.b16 %v611, %v609
        %v704 = vpack.c.b16 %v612, %v610
        %v705 = vpack.c.b16 %v615, %v613
        %v706 = vpack.c.b16 %v616, %v614
        %v707 = vpack.c.b16 %v619, %v617
        %v708 = vpack.c.b16 %v620, %v618
        %v709 = vpack.c.b16 %v623, %v621
        %v710 = vpack.c.b16 %v624, %v622
        %v711 = vpack.c.b16 %v627, %v625
        %v712 = vpack.c.b16 %v628, %v626
        %v713 = vpack.c.b16 %v631, %v629
        %v714 = vpack.c.b16 %v632, %v630
        %v715 = vpack.c.b16 %v635, %v633
        %v716 = vpack.c.b16 %v636, %v634
        %v717 = vpack.c.b16 %v639, %v637
        %v718 = vpack.c.b16 %v640, %v638
        %v719 = vpack.c.b16 %v643, %v641
        %v720 = vpack.c.b16 %v644, %v642
        %v721 = vpack.c.b16 %v647, %v645
        %v722 = vpack.c.b16 %v648, %v646
        %v723 = vpack.c.b16 %v651, %v649
        %v724 = vpack.c.b16 %v652, %v650
        %v725 = vpack.c.b16 %v655, %v653
        %v726 = vpack.c.b16 %v656, %v654
        %v727 = vpack.c.b16 %v659, %v657
        %v728 = vpack.c.b16 %v660, %v658
        %v729 = vpack.c.b16 %v663, %v661
        %v730 = vpack.c.b16 %v664, %v662
        %v731 = vpack.c.b16 %v667, %v665
        %v732 = vpack.c.b16 %v668, %v666
        %797 = vmatpush.bf16.msra.mxu0 %v683
        %798 = vmatpush.bf16.msra.mxu0 %v681
        %799 = vmatpush.bf16.msra.mxu0 %v679
        %800 = vmatpush.bf16.msra.mxu0 %v677
        %801 = vmatpush.bf16.msra.mxu0 %v675
        %802 = vmatpush.bf16.msra.mxu0 %v673
        %803 = vmatpush.bf16.msra.mxu0 %v671
        %804 = vmatpush.bf16.msra.mxu0 %v669
        %805 = vmatmul.bf16.gmra.mxu0 %v413
        %v806 = vpop.f32.mrf.mxu0
        %v807 = vadd.f32 0.0, %v806
        %v808 = vpop.f32.mrf.mxu0
        %v809 = vadd.f32 0.0, %v808
        %810 = vmatmul.bf16.gmra.mxu0 %v417
        %v811 = vpop.f32.mrf.mxu0
        %v812 = vadd.f32 0.0, %v811
        %v813 = vpop.f32.mrf.mxu0
        %v814 = vadd.f32 0.0, %v813
        %815 = vmatmul.bf16.gmra.mxu0 %v421
        %v816 = vpop.f32.mrf.mxu0
        %v817 = vadd.f32 0.0, %v816
        %v818 = vpop.f32.mrf.mxu0
        %v819 = vadd.f32 0.0, %v818
        %820 = vmatmul.bf16.gmra.mxu0 %v425
        %v821 = vpop.f32.mrf.mxu0
        %v822 = vadd.f32 0.0, %v821
        %v823 = vpop.f32.mrf.mxu0
        %v824 = vadd.f32 0.0, %v823
        %825 = vmatmul.bf16.gmra.mxu0 %v429
        %v826 = vpop.f32.mrf.mxu0
        %v827 = vadd.f32 0.0, %v826
        %v828 = vpop.f32.mrf.mxu0
        %v829 = vadd.f32 0.0, %v828
        %830 = vmatmul.bf16.gmra.mxu0 %v433
        %v831 = vpop.f32.mrf.mxu0
        %v832 = vadd.f32 0.0, %v831
        %v833 = vpop.f32.mrf.mxu0
        %v834 = vadd.f32 0.0, %v833
        %835 = vmatmul.bf16.gmra.mxu0 %v437
        %v836 = vpop.f32.mrf.mxu0
        %v837 = vadd.f32 0.0, %v836
        %v838 = vpop.f32.mrf.mxu0
        %v839 = vadd.f32 0.0, %v838
        %840 = vmatmul.bf16.gmra.mxu0 %v441
        %v841 = vpop.f32.mrf.mxu0
        %v842 = vadd.f32 0.0, %v841
        %v843 = vpop.f32.mrf.mxu0
        %v844 = vadd.f32 0.0, %v843
        %845 = vdwg.mxu0
        %846 = vmatpush.bf16.msra.mxu0 %v699
        %847 = vmatpush.bf16.msra.mxu0 %v697
        %848 = vmatpush.bf16.msra.mxu0 %v695
        %849 = vmatpush.bf16.msra.mxu0 %v693
        %850 = vmatpush.bf16.msra.mxu0 %v691
        %851 = vmatpush.bf16.msra.mxu0 %v689
        %852 = vmatpush.bf16.msra.mxu0 %v687
        %853 = vmatpush.bf16.msra.mxu0 %v685
        %854 = vmatmul.bf16.gmra.mxu0 %v414
        %v855 = vpop.f32.mrf.mxu0
        %v856 = vadd.f32 %v807, %v855
        %v857 = vpop.f32.mrf.mxu0
        %v858 = vadd.f32 %v809, %v857
        %859 = vmatmul.bf16.gmra.mxu0 %v418
        %v860 = vpop.f32.mrf.mxu0
        %v861 = vadd.f32 %v812, %v860
        %v862 = vpop.f32.mrf.mxu0
        %v863 = vadd.f32 %v814, %v862
        %864 = vmatmul.bf16.gmra.mxu0 %v422
        %v865 = vpop.f32.mrf.mxu0
        %v866 = vadd.f32 %v817, %v865
        %v867 = vpop.f32.mrf.mxu0
        %v868 = vadd.f32 %v819, %v867
        %869 = vmatmul.bf16.gmra.mxu0 %v426
        %v870 = vpop.f32.mrf.mxu0
        %v871 = vadd.f32 %v822, %v870
        %v872 = vpop.f32.mrf.mxu0
        %v873 = vadd.f32 %v824, %v872
        %874 = vmatmul.bf16.gmra.mxu0 %v430
        %v875 = vpop.f32.mrf.mxu0
        %v876 = vadd.f32 %v827, %v875
        %v877 = vpop.f32.mrf.mxu0
        %v878 = vadd.f32 %v829, %v877
        %879 = vmatmul.bf16.gmra.mxu0 %v434
        %v880 = vpop.f32.mrf.mxu0
        %v881 = vadd.f32 %v832, %v880
        %v882 = vpop.f32.mrf.mxu0
        %v883 = vadd.f32 %v834, %v882
        %884 = vmatmul.bf16.gmra.mxu0 %v438
        %v885 = vpop.f32.mrf.mxu0
        %v886 = vadd.f32 %v837, %v885
        %v887 = vpop.f32.mrf.mxu0
        %v888 = vadd.f32 %v839, %v887
        %889 = vmatmul.bf16.gmra.mxu0 %v442
        %v890 = vpop.f32.mrf.mxu0
        %v891 = vadd.f32 %v842, %v890
        %v892 = vpop.f32.mrf.mxu0
        %v893 = vadd.f32 %v844, %v892
        %894 = vdwg.mxu0
        %895 = vmatpush.bf16.msra.mxu0 %v715
        %896 = vmatpush.bf16.msra.mxu0 %v713
        %897 = vmatpush.bf16.msra.mxu0 %v711
        %898 = vmatpush.bf16.msra.mxu0 %v709
        %899 = vmatpush.bf16.msra.mxu0 %v707
        %900 = vmatpush.bf16.msra.mxu0 %v705
        %901 = vmatpush.bf16.msra.mxu0 %v703
        %902 = vmatpush.bf16.msra.mxu0 %v701
        %903 = vmatmul.bf16.gmra.mxu0 %v415
        %v904 = vpop.f32.mrf.mxu0
        %v905 = vadd.f32 %v856, %v904
        %v906 = vpop.f32.mrf.mxu0
        %v907 = vadd.f32 %v858, %v906
        %908 = vmatmul.bf16.gmra.mxu0 %v419
        %v909 = vpop.f32.mrf.mxu0
        %v910 = vadd.f32 %v861, %v909
        %v911 = vpop.f32.mrf.mxu0
        %v912 = vadd.f32 %v863, %v911
        %913 = vmatmul.bf16.gmra.mxu0 %v423
        %v914 = vpop.f32.mrf.mxu0
        %v915 = vadd.f32 %v866, %v914
        %v916 = vpop.f32.mrf.mxu0
        %v917 = vadd.f32 %v868, %v916
        %918 = vmatmul.bf16.gmra.mxu0 %v427
        %v919 = vpop.f32.mrf.mxu0
        %v920 = vadd.f32 %v871, %v919
        %v921 = vpop.f32.mrf.mxu0
        %v922 = vadd.f32 %v873, %v921
        %923 = vmatmul.bf16.gmra.mxu0 %v431
        %v924 = vpop.f32.mrf.mxu0
        %v925 = vadd.f32 %v876, %v924
        %v926 = vpop.f32.mrf.mxu0
        %v927 = vadd.f32 %v878, %v926
        %928 = vmatmul.bf16.gmra.mxu0 %v435
        %v929 = vpop.f32.mrf.mxu0
        %v930 = vadd.f32 %v881, %v929
        %v931 = vpop.f32.mrf.mxu0
        %v932 = vadd.f32 %v883, %v931
        %933 = vmatmul.bf16.gmra.mxu0 %v439
        %v934 = vpop.f32.mrf.mxu0
        %v935 = vadd.f32 %v886, %v934
        %v936 = vpop.f32.mrf.mxu0
        %v937 = vadd.f32 %v888, %v936
        %938 = vmatmul.bf16.gmra.mxu0 %v443
        %v939 = vpop.f32.mrf.mxu0
        %v940 = vadd.f32 %v891, %v939
        %v941 = vpop.f32.mrf.mxu0
        %v942 = vadd.f32 %v893, %v941
        %943 = vdwg.mxu0
        %944 = vmatpush.bf16.msra.mxu0 %v731
        %945 = vmatpush.bf16.msra.mxu0 %v729
        %946 = vmatpush.bf16.msra.mxu0 %v727
        %947 = vmatpush.bf16.msra.mxu0 %v725
        %948 = vmatpush.bf16.msra.mxu0 %v723
        %949 = vmatpush.bf16.msra.mxu0 %v721
        %950 = vmatpush.bf16.msra.mxu0 %v719
        %951 = vmatpush.bf16.msra.mxu0 %v717
        %952 = vmatmul.bf16.gmra.mxu0 %v416
        %v953 = vpop.f32.mrf.mxu0
        %v954 = vadd.f32 %v905, %v953
        %v955 = vpop.f32.mrf.mxu0
        %v956 = vadd.f32 %v907, %v955
        %957 = vmatmul.bf16.gmra.mxu0 %v420
        %v958 = vpop.f32.mrf.mxu0
        %v959 = vadd.f32 %v910, %v958
        %v960 = vpop.f32.mrf.mxu0
        %v961 = vadd.f32 %v912, %v960
        %962 = vmatmul.bf16.gmra.mxu0 %v424
        %v963 = vpop.f32.mrf.mxu0
        %v964 = vadd.f32 %v915, %v963
        %v965 = vpop.f32.mrf.mxu0
        %v966 = vadd.f32 %v917, %v965
        %967 = vmatmul.bf16.gmra.mxu0 %v428
        %v968 = vpop.f32.mrf.mxu0
        %v969 = vadd.f32 %v920, %v968
        %v970 = vpop.f32.mrf.mxu0
        %v971 = vadd.f32 %v922, %v970
        %972 = vmatmul.bf16.gmra.mxu0 %v432
        %v973 = vpop.f32.mrf.mxu0
        %v974 = vadd.f32 %v925, %v973
        %v975 = vpop.f32.mrf.mxu0
        %v976 = vadd.f32 %v927, %v975
        %977 = vmatmul.bf16.gmra.mxu0 %v436
        %v978 = vpop.f32.mrf.mxu0
        %v979 = vadd.f32 %v930, %v978
        %v980 = vpop.f32.mrf.mxu0
        %v981 = vadd.f32 %v932, %v980
        %982 = vmatmul.bf16.gmra.mxu0 %v440
        %v983 = vpop.f32.mrf.mxu0
        %v984 = vadd.f32 %v935, %v983
        %v985 = vpop.f32.mrf.mxu0
        %v986 = vadd.f32 %v937, %v985
        %987 = vmatmul.bf16.gmra.mxu0 %v444
        %v988 = vpop.f32.mrf.mxu0
        %v989 = vadd.f32 %v940, %v988
        %v990 = vpop.f32.mrf.mxu0
        %v991 = vadd.f32 %v942, %v990
        %992 = vdwg.mxu0
        %993 = vmatpush.bf16.msra.mxu0 %v684
        %994 = vmatpush.bf16.msra.mxu0 %v682
        %995 = vmatpush.bf16.msra.mxu0 %v680
        %996 = vmatpush.bf16.msra.mxu0 %v678
        %997 = vmatpush.bf16.msra.mxu0 %v676
        %998 = vmatpush.bf16.msra.mxu0 %v674
        %999 = vmatpush.bf16.msra.mxu0 %v672
        %1000 = vmatpush.bf16.msra.mxu0 %v670
        %1001 = vmatmul.bf16.gmra.mxu0 %v413
        %v1002 = vpop.f32.mrf.mxu0
        %v1003 = vadd.f32 0.0, %v1002
        %v1004 = vpop.f32.mrf.mxu0
        %v1005 = vadd.f32 0.0, %v1004
        %1006 = vmatmul.bf16.gmra.mxu0 %v417
        %v1007 = vpop.f32.mrf.mxu0
        %v1008 = vadd.f32 0.0, %v1007
        %v1009 = vpop.f32.mrf.mxu0
        %v1010 = vadd.f32 0.0, %v1009
        %1011 = vmatmul.bf16.gmra.mxu0 %v421
        %v1012 = vpop.f32.mrf.mxu0
        %v1013 = vadd.f32 0.0, %v1012
        %v1014 = vpop.f32.mrf.mxu0
        %v1015 = vadd.f32 0.0, %v1014
        %1016 = vmatmul.bf16.gmra.mxu0 %v425
        %v1017 = vpop.f32.mrf.mxu0
        %v1018 = vadd.f32 0.0, %v1017
        %v1019 = vpop.f32.mrf.mxu0
        %v1020 = vadd.f32 0.0, %v1019
        %1021 = vmatmul.bf16.gmra.mxu0 %v429
        %v1022 = vpop.f32.mrf.mxu0
        %v1023 = vadd.f32 0.0, %v1022
        %v1024 = vpop.f32.mrf.mxu0
        %v1025 = vadd.f32 0.0, %v1024
        %1026 = vmatmul.bf16.gmra.mxu0 %v433
        %v1027 = vpop.f32.mrf.mxu0
        %v1028 = vadd.f32 0.0, %v1027
        %v1029 = vpop.f32.mrf.mxu0
        %v1030 = vadd.f32 0.0, %v1029
        %1031 = vmatmul.bf16.gmra.mxu0 %v437
        %v1032 = vpop.f32.mrf.mxu0
        %v1033 = vadd.f32 0.0, %v1032
        %v1034 = vpop.f32.mrf.mxu0
        %v1035 = vadd.f32 0.0, %v1034
        %1036 = vmatmul.bf16.gmra.mxu0 %v441
        %v1037 = vpop.f32.mrf.mxu0
        %v1038 = vadd.f32 0.0, %v1037
        %v1039 = vpop.f32.mrf.mxu0
        %v1040 = vadd.f32 0.0, %v1039
        %1041 = vdwg.mxu0
        %1042 = vmatpush.bf16.msra.mxu0 %v700
        %1043 = vmatpush.bf16.msra.mxu0 %v698
        %1044 = vmatpush.bf16.msra.mxu0 %v696
        %1045 = vmatpush.bf16.msra.mxu0 %v694
        %1046 = vmatpush.bf16.msra.mxu0 %v692
        %1047 = vmatpush.bf16.msra.mxu0 %v690
        %1048 = vmatpush.bf16.msra.mxu0 %v688
        %1049 = vmatpush.bf16.msra.mxu0 %v686
        %1050 = vmatmul.bf16.gmra.mxu0 %v414
        %v1051 = vpop.f32.mrf.mxu0
        %v1052 = vadd.f32 %v1003, %v1051
        %v1053 = vpop.f32.mrf.mxu0
        %v1054 = vadd.f32 %v1005, %v1053
        %1055 = vmatmul.bf16.gmra.mxu0 %v418
        %v1056 = vpop.f32.mrf.mxu0
        %v1057 = vadd.f32 %v1008, %v1056
        %v1058 = vpop.f32.mrf.mxu0
        %v1059 = vadd.f32 %v1010, %v1058
        %1060 = vmatmul.bf16.gmra.mxu0 %v422
        %v1061 = vpop.f32.mrf.mxu0
        %v1062 = vadd.f32 %v1013, %v1061
        %v1063 = vpop.f32.mrf.mxu0
        %v1064 = vadd.f32 %v1015, %v1063
        %1065 = vmatmul.bf16.gmra.mxu0 %v426
        %v1066 = vpop.f32.mrf.mxu0
        %v1067 = vadd.f32 %v1018, %v1066
        %v1068 = vpop.f32.mrf.mxu0
        %v1069 = vadd.f32 %v1020, %v1068
        %1070 = vmatmul.bf16.gmra.mxu0 %v430
        %v1071 = vpop.f32.mrf.mxu0
        %v1072 = vadd.f32 %v1023, %v1071
        %v1073 = vpop.f32.mrf.mxu0
        %v1074 = vadd.f32 %v1025, %v1073
        %1075 = vmatmul.bf16.gmra.mxu0 %v434
        %v1076 = vpop.f32.mrf.mxu0
        %v1077 = vadd.f32 %v1028, %v1076
        %v1078 = vpop.f32.mrf.mxu0
        %v1079 = vadd.f32 %v1030, %v1078
        %1080 = vmatmul.bf16.gmra.mxu0 %v438
        %v1081 = vpop.f32.mrf.mxu0
        %v1082 = vadd.f32 %v1033, %v1081
        %v1083 = vpop.f32.mrf.mxu0
        %v1084 = vadd.f32 %v1035, %v1083
        %1085 = vmatmul.bf16.gmra.mxu0 %v442
        %v1086 = vpop.f32.mrf.mxu0
        %v1087 = vadd.f32 %v1038, %v1086
        %v1088 = vpop.f32.mrf.mxu0
        %v1089 = vadd.f32 %v1040, %v1088
        %1090 = vdwg.mxu0
        %1091 = vmatpush.bf16.msra.mxu0 %v716
        %1092 = vmatpush.bf16.msra.mxu0 %v714
        %1093 = vmatpush.bf16.msra.mxu0 %v712
        %1094 = vmatpush.bf16.msra.mxu0 %v710
        %1095 = vmatpush.bf16.msra.mxu0 %v708
        %1096 = vmatpush.bf16.msra.mxu0 %v706
        %1097 = vmatpush.bf16.msra.mxu0 %v704
        %1098 = vmatpush.bf16.msra.mxu0 %v702
        %1099 = vmatmul.bf16.gmra.mxu0 %v415
        %v1100 = vpop.f32.mrf.mxu0
        %v1101 = vadd.f32 %v1052, %v1100
        %v1102 = vpop.f32.mrf.mxu0
        %v1103 = vadd.f32 %v1054, %v1102
        %1104 = vmatmul.bf16.gmra.mxu0 %v419
        %v1105 = vpop.f32.mrf.mxu0
        %v1106 = vadd.f32 %v1057, %v1105
        %v1107 = vpop.f32.mrf.mxu0
        %v1108 = vadd.f32 %v1059, %v1107
        %1109 = vmatmul.bf16.gmra.mxu0 %v423
        %v1110 = vpop.f32.mrf.mxu0
        %v1111 = vadd.f32 %v1062, %v1110
        %v1112 = vpop.f32.mrf.mxu0
        %v1113 = vadd.f32 %v1064, %v1112
        %1114 = vmatmul.bf16.gmra.mxu0 %v427
        %v1115 = vpop.f32.mrf.mxu0
        %v1116 = vadd.f32 %v1067, %v1115
        %v1117 = vpop.f32.mrf.mxu0
        %v1118 = vadd.f32 %v1069, %v1117
        %1119 = vmatmul.bf16.gmra.mxu0 %v431
        %v1120 = vpop.f32.mrf.mxu0
        %v1121 = vadd.f32 %v1072, %v1120
        %v1122 = vpop.f32.mrf.mxu0
        %v1123 = vadd.f32 %v1074, %v1122
        %1124 = vmatmul.bf16.gmra.mxu0 %v435
        %v1125 = vpop.f32.mrf.mxu0
        %v1126 = vadd.f32 %v1077, %v1125
        %v1127 = vpop.f32.mrf.mxu0
        %v1128 = vadd.f32 %v1079, %v1127
        %1129 = vmatmul.bf16.gmra.mxu0 %v439
        %v1130 = vpop.f32.mrf.mxu0
        %v1131 = vadd.f32 %v1082, %v1130
        %v1132 = vpop.f32.mrf.mxu0
        %v1133 = vadd.f32 %v1084, %v1132
        %1134 = vmatmul.bf16.gmra.mxu0 %v443
        %v1135 = vpop.f32.mrf.mxu0
        %v1136 = vadd.f32 %v1087, %v1135
        %v1137 = vpop.f32.mrf.mxu0
        %v1138 = vadd.f32 %v1089, %v1137
        %1139 = vdwg.mxu0
        %1140 = vmatpush.bf16.msra.mxu0 %v732
        %1141 = vmatpush.bf16.msra.mxu0 %v730
        %1142 = vmatpush.bf16.msra.mxu0 %v728
        %1143 = vmatpush.bf16.msra.mxu0 %v726
        %1144 = vmatpush.bf16.msra.mxu0 %v724
        %1145 = vmatpush.bf16.msra.mxu0 %v722
        %1146 = vmatpush.bf16.msra.mxu0 %v720
        %1147 = vmatpush.bf16.msra.mxu0 %v718
        %1148 = vmatmul.bf16.gmra.mxu0 %v416
        %v1149 = vpop.f32.mrf.mxu0
        %v1150 = vadd.f32 %v1101, %v1149
        %v1151 = vpop.f32.mrf.mxu0
        %v1152 = vadd.f32 %v1103, %v1151
        %1153 = vmatmul.bf16.gmra.mxu0 %v420
        %v1154 = vpop.f32.mrf.mxu0
        %v1155 = vadd.f32 %v1106, %v1154
        %v1156 = vpop.f32.mrf.mxu0
        %v1157 = vadd.f32 %v1108, %v1156
        %1158 = vmatmul.bf16.gmra.mxu0 %v424
        %v1159 = vpop.f32.mrf.mxu0
        %v1160 = vadd.f32 %v1111, %v1159
        %v1161 = vpop.f32.mrf.mxu0
        %v1162 = vadd.f32 %v1113, %v1161
        %1163 = vmatmul.bf16.gmra.mxu0 %v428
        %v1164 = vpop.f32.mrf.mxu0
        %v1165 = vadd.f32 %v1116, %v1164
        %v1166 = vpop.f32.mrf.mxu0
        %v1167 = vadd.f32 %v1118, %v1166
        %1168 = vmatmul.bf16.gmra.mxu0 %v432
        %v1169 = vpop.f32.mrf.mxu0
        %v1170 = vadd.f32 %v1121, %v1169
        %v1171 = vpop.f32.mrf.mxu0
        %v1172 = vadd.f32 %v1123, %v1171
        %1173 = vmatmul.bf16.gmra.mxu0 %v436
        %v1174 = vpop.f32.mrf.mxu0
        %v1175 = vadd.f32 %v1126, %v1174
        %v1176 = vpop.f32.mrf.mxu0
        %v1177 = vadd.f32 %v1128, %v1176
        %1178 = vmatmul.bf16.gmra.mxu0 %v440
        %v1179 = vpop.f32.mrf.mxu0
        %v1180 = vadd.f32 %v1131, %v1179
        %v1181 = vpop.f32.mrf.mxu0
        %v1182 = vadd.f32 %v1133, %v1181
        %1183 = vmatmul.bf16.gmra.mxu0 %v444
        %v1184 = vpop.f32.mrf.mxu0
        %v1185 = vadd.f32 %v1136, %v1184
        %v1186 = vpop.f32.mrf.mxu0
        %v1187 = vadd.f32 %v1138, %v1186
        %1188 = vdwg.mxu0
        %v1189 = vadd.f32 %v954, %v956
        %v1190 = vadd.f32 %v1189, %v959
        %v1191 = vadd.f32 %v1190, %v961
        %v1192 = vadd.f32 %v1191, %v964
        %v1193 = vadd.f32 %v1192, %v966
        %v1194 = vadd.f32 %v1193, %v969
        %v1195 = vadd.f32 %v1194, %v971
        %v1196 = vadd.f32 %v1195, %v974
        %v1197 = vadd.f32 %v1196, %v976
        %v1198 = vadd.f32 %v1197, %v979
        %v1199 = vadd.f32 %v1198, %v981
        %v1200 = vadd.f32 %v1199, %v984
        %v1201 = vadd.f32 %v1200, %v986
        %v1202 = vadd.f32 %v1201, %v989
        %v1203 = vadd.f32 %v1202, %v991
        %v1204 = vrot.slane %v1203, 4
        %v1205 = vadd.f32 %v1203, %v1204
        %v1206 = vrot.slane %v1205, 2
        %v1207 = vadd.f32 %v1205, %v1206
        %v1208 = vrot.slane %v1207, 1
        %v1209 = vadd.f32 %v1207, %v1208
        %v1210 = vadd.f32 %v1150, %v1152
        %v1211 = vadd.f32 %v1210, %v1155
        %v1212 = vadd.f32 %v1211, %v1157
        %v1213 = vadd.f32 %v1212, %v1160
        %v1214 = vadd.f32 %v1213, %v1162
        %v1215 = vadd.f32 %v1214, %v1165
        %v1216 = vadd.f32 %v1215, %v1167
        %v1217 = vadd.f32 %v1216, %v1170
        %v1218 = vadd.f32 %v1217, %v1172
        %v1219 = vadd.f32 %v1218, %v1175
        %v1220 = vadd.f32 %v1219, %v1177
        %v1221 = vadd.f32 %v1220, %v1180
        %v1222 = vadd.f32 %v1221, %v1182
        %v1223 = vadd.f32 %v1222, %v1185
        %v1224 = vadd.f32 %v1223, %v1187
        %v1225 = vrot.slane %v1224, 4
        %v1226 = vadd.f32 %v1224, %v1225
        %v1227 = vrot.slane %v1226, 2
        %v1228 = vadd.f32 %v1226, %v1227
        %v1229 = vrot.slane %v1228, 1
        %v1230 = vadd.f32 %v1228, %v1229
        %v1233 = vrot.slane %v1230, 7
        %vm1234 = vcmask 1040384
        %v1235 = vsel %vm1234, %v1209, %v1233
        %v1237 = vlaneseq
        %vm1238 = vcmp.ge.s32.totalorder %v1237, 0
        %vm1239 = vcmp.lt.s32.totalorder %v1237, 256
        %vm1240 = vmand %vm1238, %vm1239
        %1241 = vst.msk [vmem:[%s212] sm:$0x3] %vm1240, %v1235
        %v1242 = vmul.f32 %v954, %v954
        %v1243 = vmul.f32 %v1150, %v1150
        %v1244 = vmul.f32 %v956, %v956
        %v1245 = vmul.f32 %v1152, %v1152
        %v1246 = vmul.f32 %v959, %v959
        %v1247 = vmul.f32 %v1155, %v1155
        %v1248 = vmul.f32 %v961, %v961
        %v1249 = vmul.f32 %v1157, %v1157
        %v1250 = vmul.f32 %v964, %v964
        %v1251 = vmul.f32 %v1160, %v1160
        %v1252 = vmul.f32 %v966, %v966
        %v1253 = vmul.f32 %v1162, %v1162
        %v1254 = vmul.f32 %v969, %v969
        %v1255 = vmul.f32 %v1165, %v1165
        %v1256 = vmul.f32 %v971, %v971
        %v1257 = vmul.f32 %v1167, %v1167
        %v1258 = vmul.f32 %v974, %v974
        %v1259 = vmul.f32 %v1170, %v1170
        %v1260 = vmul.f32 %v976, %v976
        %v1261 = vmul.f32 %v1172, %v1172
        %v1262 = vmul.f32 %v979, %v979
        %v1263 = vmul.f32 %v1175, %v1175
        %v1264 = vmul.f32 %v981, %v981
        %v1265 = vmul.f32 %v1177, %v1177
        %v1266 = vmul.f32 %v984, %v984
        %v1267 = vmul.f32 %v1180, %v1180
        %v1268 = vmul.f32 %v986, %v986
        %v1269 = vmul.f32 %v1182, %v1182
        %v1270 = vmul.f32 %v989, %v989
        %v1271 = vmul.f32 %v1185, %v1185
        %v1272 = vmul.f32 %v991, %v991
        %v1273 = vmul.f32 %v1187, %v1187
        %v1274 = vadd.f32 %v1242, %v1244
        %v1275 = vadd.f32 %v1274, %v1246
        %v1276 = vadd.f32 %v1275, %v1248
        %v1277 = vadd.f32 %v1276, %v1250
        %v1278 = vadd.f32 %v1277, %v1252
        %v1279 = vadd.f32 %v1278, %v1254
        %v1280 = vadd.f32 %v1279, %v1256
        %v1281 = vadd.f32 %v1280, %v1258
        %v1282 = vadd.f32 %v1281, %v1260
        %v1283 = vadd.f32 %v1282, %v1262
        %v1284 = vadd.f32 %v1283, %v1264
        %v1285 = vadd.f32 %v1284, %v1266
        %v1286 = vadd.f32 %v1285, %v1268
        %v1287 = vadd.f32 %v1286, %v1270
        %v1288 = vadd.f32 %v1287, %v1272
        %v1289 = vrot.slane %v1288, 4
        %v1290 = vadd.f32 %v1288, %v1289
        %v1291 = vrot.slane %v1290, 2
        %v1292 = vadd.f32 %v1290, %v1291
        %v1293 = vrot.slane %v1292, 1
        %v1294 = vadd.f32 %v1292, %v1293
        %v1295 = vadd.f32 %v1243, %v1245
        %v1296 = vadd.f32 %v1295, %v1247
        %v1297 = vadd.f32 %v1296, %v1249
        %v1298 = vadd.f32 %v1297, %v1251
        %v1299 = vadd.f32 %v1298, %v1253
        %v1300 = vadd.f32 %v1299, %v1255
        %v1301 = vadd.f32 %v1300, %v1257
        %v1302 = vadd.f32 %v1301, %v1259
        %v1303 = vadd.f32 %v1302, %v1261
        %v1304 = vadd.f32 %v1303, %v1263
        %v1305 = vadd.f32 %v1304, %v1265
        %v1306 = vadd.f32 %v1305, %v1267
        %v1307 = vadd.f32 %v1306, %v1269
        %v1308 = vadd.f32 %v1307, %v1271
        %v1309 = vadd.f32 %v1308, %v1273
        %v1310 = vrot.slane %v1309, 4
        %v1311 = vadd.f32 %v1309, %v1310
        %v1312 = vrot.slane %v1311, 2
        %v1313 = vadd.f32 %v1311, %v1312
        %v1314 = vrot.slane %v1313, 1
        %v1315 = vadd.f32 %v1313, %v1314
        %v1318 = vrot.slane %v1315, 7
        %v1319 = vsel %vm1234, %v1294, %v1318
        %1321 = vst.msk [vmem:[%s219] sm:$0x3] %vm1240, %v1319
        %s1322 = sand.u32 %s80, 1
        %s1323 = scalar_lea.sflag [#allocation4], %s1322
        %s1324 = sand.u32 %s80, 1
        %s1325 = smul.addr %s1324, 2
        %s1326 = scalar_lea.vmem [#allocation7], %s1325
        %s1327 = sand.u32 %s106, 1
        %s1328 = scalar_lea.sflag [#allocation9], %s1327
        %s1329 = sand.u32 %s106, 1
        %s1330 = smul.addr %s1329, 2
        %s1331 = scalar_lea.vmem [#allocation8], %s1330
        // Predicated region
        $region37: #{tpu_custom_call.1} parent=27 // pred_check
          %p1332 = pneg %p90
        $region38: #{tpu_custom_call.1} parent=27 // pred_check_branch
          %1334 = sbr.rel (%p1332) target = $region40
        $region39: #{tpu_custom_call.1} parent=27 // pred_region
          %1336 = vsyncadd %s1323, 0
          %s1337 = smul.addr %s25, 2
          %s1338 = scalar_lea.hbm %s2, %s1337
          %s1340 = sshll.u32 %s1326, 4
          %s1341 = int_to_ptr.vmem [resolvable:$true] %s1340
          %s1342 = sshll.u32 %s1338, 4
          %s1343 = int_to_ptr.hbm [resolvable:$true] %s1342
          %1345 = dma.vmem_to_hbm [thread:$0]  %s1341, 32, %s1343, %s1323
        $region40: #{tpu_custom_call.1} parent=27 // pred_fallthru
          _
        // Predicated region
        $region41: #{tpu_custom_call.1} parent=27 // pred_check
          %p1346 = pneg %p116
        $region42: #{tpu_custom_call.1} parent=27 // pred_check_branch
          %1348 = sbr.rel (%p1346) target = $region44
        $region43: #{tpu_custom_call.1} parent=27 // pred_region
          %1350 = vsyncadd %s1328, 0
          %s1351 = smul.addr %s25, 2
          %s1352 = scalar_lea.hbm %s3, %s1351
          %s1354 = sshll.u32 %s1331, 4
          %s1355 = int_to_ptr.vmem [resolvable:$true] %s1354
          %s1356 = sshll.u32 %s1352, 4
          %s1357 = int_to_ptr.hbm [resolvable:$true] %s1356
          %1359 = dma.vmem_to_hbm [thread:$0]  %s1355, 32, %s1357, %s1328
        $region44: #{tpu_custom_call.1} parent=27 // pred_fallthru
          _
      $region28: #{tpu_custom_call.1} parent=5 // pred_fallthru
        _
      %p1360 = scmp.le.s32.totalorder 2, %s20
      // Predicated region
      $region45: #{tpu_custom_call.1} parent=5 // pred_check
        %p1361 = pneg %p1360
      $region46: #{tpu_custom_call.1} parent=5 // pred_check_branch
        %1363 = sbr.rel (%p1361) target = $region48
      $region47: #{tpu_custom_call.1} parent=5 // pred_region
        %s1364 = ssub.s32 %s20, 2
        // Predicated region
        $region49: #{tpu_custom_call.1} parent=47 // pred_check
          %p1365 = pneg %p96
        $region50: #{tpu_custom_call.1} parent=47 // pred_check_branch
          %1367 = sbr.rel (%p1365) target = $region52
        $region51: #{tpu_custom_call.1} parent=47 // pred_region
          %s1368 = sand.u32 %s81, 1
          %s1369 = scalar_lea.sflag [#allocation4], %s1368
          %s1370 = sand.u32 %s81, 1
          %s1371 = smul.addr %s1370, 2
          %s1372 = scalar_lea.vmem [#allocation7], %s1371
          %1374 = dma.done %s1369, 32
        $region52: #{tpu_custom_call.1} parent=47 // pred_fallthru
          _
        // Predicated region
        $region53: #{tpu_custom_call.1} parent=47 // pred_check
          %p1375 = pneg %p122
        $region54: #{tpu_custom_call.1} parent=47 // pred_check_branch
          %1377 = sbr.rel (%p1375) target = $region56
        $region55: #{tpu_custom_call.1} parent=47 // pred_region
          %s1378 = sand.u32 %s107, 1
          %s1379 = scalar_lea.sflag [#allocation9], %s1378
          %s1380 = sand.u32 %s107, 1
          %s1381 = smul.addr %s1380, 2
          %s1382 = scalar_lea.vmem [#allocation8], %s1381
          %1384 = dma.done %s1379, 32
        $region56: #{tpu_custom_call.1} parent=47 // pred_fallthru
          _
      $region48: #{tpu_custom_call.1} parent=5 // pred_fallthru
        _
    $region6: #{tpu_custom_call.1} parent=1 // loop_footer
      %s24 = sadd.s32 1, %s20
    $region7: #{tpu_custom_call.1} parent=1 // loop_footer_branch
      %19 = sbr.rel target = $region3
    $region8: #{tpu_custom_call.1} parent=1 // loop_exit
      _
    %1385 = vsyncpa [#allocation3], 1
    %s1386 = scalar_lea.sflag [#allocation3], 1
    %1387 = vsyncpa %s1386, 1
    %1388 = vsyncpa [#allocation6], 1
    %1389 = vsyncpa [#allocation4], 1
    %s1390 = scalar_lea.sflag [#allocation4], 1
    %1391 = vsyncpa %s1390, 1
    %1392 = vsyncpa [#allocation9], 1
    %s1393 = scalar_lea.sflag [#allocation9], 1
    %1394 = vsyncpa %s1393, 1

</llo_original>
